<compile_context>
chip_gen: v5e
topology: v5e:2x2
jax: 0.10.0
libtpu: 0.0.40
codegen_flags: <defaults>
</compile_context>

<pallas_src>
import functools

import jax
import jax.numpy as jnp
from jax.experimental import pallas as pl
from jax.experimental.pallas import tpu as pltpu

_LANES = 128
_SUBLANES = 8
_MAX_TILE_ROWS = 2048  # (2048, 128) f32 = 1 MiB per input per pipeline buffer


def _row_granularity(dtype):
    """Row multiple for a clean TPU tile for this dtype (8 for f32, 16 bf16)."""
    itemsize = jnp.dtype(dtype).itemsize
    return _SUBLANES * max(1, 4 // itemsize)


def _pearson_stats_kernel(x_ref, y_ref, stats_ref, *, rows, tile_rows,
                          needs_mask):
    """Accumulate the 5 sufficient statistics as (8, 128) vreg-shaped slabs.

    stats_ref (f32, shape (5, 8, 128)):
      [0] sum(x)  [1] sum(y)  [2] sum(x*y)  [3] sum(x*x)  [4] sum(y*y)
    The output block index is constant across the grid, so stats_ref stays
    resident in VMEM (accumulator) and is written back to HBM once.
    """
    i = pl.program_id(0)

    @pl.when(i == 0)
    def _init():
        stats_ref[...] = jnp.zeros_like(stats_ref)

    x = x_ref[...].astype(jnp.float32)
    y = y_ref[...].astype(jnp.float32)

    if needs_mask:
        # Ragged last row-tile: rows >= `rows` hold unspecified data -> zero.
        valid = rows - i * tile_rows
        row_ids = jax.lax.broadcasted_iota(jnp.int32, (tile_rows, _LANES), 0)
        m = row_ids < valid
        x = jnp.where(m, x, 0.0)
        y = jnp.where(m, y, 0.0)

    # Keep the loop on the VPU: reduce the leading (vreg-count) axis with
    # elementwise adds; cross-lane/sublane reduction happens in the wrapper.
    x3 = x.reshape(tile_rows // _SUBLANES, _SUBLANES, _LANES)
    y3 = y.reshape(tile_rows // _SUBLANES, _SUBLANES, _LANES)

    stats_ref[0] += jnp.sum(x3, axis=0)
    stats_ref[1] += jnp.sum(y3, axis=0)
    stats_ref[2] += jnp.sum(x3 * y3, axis=0)
    stats_ref[3] += jnp.sum(x3 * x3, axis=0)
    stats_ref[4] += jnp.sum(y3 * y3, axis=0)


def pearson_loss(pred, label):
    """(1 - pearsonr(pred, label))**2 over all elements. Returns f32 scalar."""
    assert pred.shape == label.shape
    n = int(pred.size)
    assert n > 1

    x_flat = jnp.ravel(pred)   # native dtype; kernel upcasts to f32
    y_flat = jnp.ravel(label)

    gran = max(_row_granularity(x_flat.dtype), _row_granularity(y_flat.dtype))
    rows = n // _LANES
    if rows < gran:
        rows = 0               # too small for a TPU tile; pure-JAX fallback

    stats = jnp.zeros((5,), jnp.float32)

    if rows > 0:
        tile_rows = min(_MAX_TILE_ROWS, (rows // gran) * gran)
        num_tiles = pl.cdiv(rows, tile_rows)
        needs_mask = (rows % tile_rows) != 0

        n_main = rows * _LANES
        if n_main == n:
            x2d = x_flat.reshape(rows, _LANES)   # bitcast reshape, no copy
            y2d = y_flat.reshape(rows, _LANES)
        else:
            # <128 trailing elements handled below in plain JAX (no full-array
            # padded copy as in the previous version).
            x2d = x_flat[:n_main].reshape(rows, _LANES)
            y2d = y_flat[:n_main].reshape(rows, _LANES)

        kernel = functools.partial(_pearson_stats_kernel, rows=rows,
                                   tile_rows=tile_rows, needs_mask=needs_mask)

        bytes_accessed = (n_main * (x_flat.dtype.itemsize +
                                    y_flat.dtype.itemsize)
                          + 5 * _SUBLANES * _LANES * 4)

        slab = pl.pallas_call(
            kernel,
            out_shape=jax.ShapeDtypeStruct((5, _SUBLANES, _LANES),
                                           jnp.float32),
            grid_spec=pltpu.PrefetchScalarGridSpec(
                num_scalar_prefetch=0,
                grid=(num_tiles,),
                in_specs=[
                    pl.BlockSpec((tile_rows, _LANES), lambda i: (i, 0)),
                    pl.BlockSpec((tile_rows, _LANES), lambda i: (i, 0)),
                ],
                out_specs=pl.BlockSpec((5, _SUBLANES, _LANES),
                                       lambda i: (0, 0, 0)),
            ),
            compiler_params=pltpu.CompilerParams(
                dimension_semantics=("arbitrary",),
                vmem_limit_bytes=32 * 1024 * 1024,
            ),
            cost_estimate=pl.CostEstimate(
                flops=8 * n_main,
                transcendentals=0,
                bytes_accessed=bytes_accessed),
        )(x2d, y2d)
        stats = jnp.sum(slab, axis=(1, 2))

    # Tail (< 128 elements) and tiny-input fallback, directly in JAX.
    if rows * _LANES != n:
        xt = x_flat[rows * _LANES:].astype(jnp.float32)
        yt = y_flat[rows * _LANES:].astype(jnp.float32)
        stats = stats + jnp.stack([xt.sum(), yt.sum(), (xt * yt).sum(),
                                   (xt * xt).sum(), (yt * yt).sum()])

    sx, sy, sxy, sxx, syy = stats
    n_f = jnp.float32(n)
    # Single-pass covariance (common 1/n factor cancels in r).  Note: like the
    # reference, yields NaN for zero-variance inputs; single-pass form can
    # lose precision if the data mean is huge relative to its std.
    cov = sxy - sx * sy / n_f
    vx = sxx - sx * sx / n_f
    vy = syy - sy * sy / n_f
    r = cov / (jnp.sqrt(vx) * jnp.sqrt(vy))
    return (1.0 - r) ** 2


def _pearson_loss_ref(pred, label):
    x = jnp.ravel(pred).astype(jnp.float32)
    y = jnp.ravel(label).astype(jnp.float32)
    xm = x - jnp.mean(x)
    ym = y - jnp.mean(y)
    r = jnp.dot(xm, ym) / (jnp.linalg.norm(xm) * jnp.linalg.norm(ym))
    return (1.0 - r) ** 2


if __name__ == "__main__":
    key = jax.random.PRNGKey(0)
    k1, k2, k3, k4 = jax.random.split(key, 4)

    # Test 1: f32, (2, 4, 16, 16) -> n = 2048 (lane-divisible; no mask/tail).
    pred = jax.random.normal(k1, (2, 4, 16, 16), dtype=jnp.float32)
    label = 0.7 * pred + 0.3 * jax.random.normal(k2, pred.shape, jnp.float32)
    loss = jax.block_until_ready(pearson_loss(pred, label))
    ref = jax.block_until_ready(_pearson_loss_ref(pred, label))
    assert jnp.allclose(loss, ref, atol=1e-5, rtol=1e-4), (loss, ref)

    # Test 2: bf16, (3, 823) -> n = 2469 (exercises native-bf16 streaming, the
    # in-kernel ragged-row mask, and the <128-element JAX tail).
    pred2 = jax.random.normal(k3, (3, 823), dtype=jnp.float32)
    noise = jax.random.normal(k4, (3, 823), dtype=jnp.float32)
    pred2_bf = pred2.astype(jnp.bfloat16)
    label2_bf = (0.6 * pred2 + 0.4 * noise).astype(jnp.bfloat16)
    loss2 = jax.block_until_ready(pearson_loss(pred2_bf, label2_bf))
    ref2 = jax.block_until_ready(_pearson_loss_ref(pred2_bf, label2_bf))
    assert jnp.allclose(loss2, ref2, atol=1e-4, rtol=1e-3), (loss2, ref2)

    print("KERNEL_OK")
</pallas_src>

<mosaic_0001>
module attributes {stable_mosaic.version = 11 : i64} {
  func.func @_pearson_stats_kernel(%arg0: i32, %arg1: memref<16x128xf32, #tpu.memory_space<vmem>>, %arg2: memref<16x128xf32, #tpu.memory_space<vmem>>, %arg3: memref<5x8x128xf32, #tpu.memory_space<vmem>>) attributes {dimension_semantics = [#tpu.dimension_semantics<arbitrary>], iteration_bounds = array<i64: 1>, scalar_prefetch = 0 : i64, scratch_operands = 0 : i64, tpu.core_type = #tpu.core_type<tc>, window_params = [{transform_indices = @transform_0, window_bounds = array<i64: 16, 128>}, {transform_indices = @transform_1, window_bounds = array<i64: 16, 128>}, {pipeline_mode = #tpu.pipeline_mode<synchronous>, transform_indices = @transform_2, window_bounds = array<i64: 5, 8, 128>}]} {
    %c0_i32 = arith.constant 0 : i32
    %0 = arith.cmpi eq, %arg0, %c0_i32 : i32
    %1 = arith.extui %0 : i1 to i32
    %c0_i32_0 = arith.constant 0 : i32
    %2 = arith.cmpi ne, %1, %c0_i32_0 : i32
    scf.if %2 {
      %cst_34 = arith.constant 0.000000e+00 : f32
      %45 = vector.broadcast %cst_34 : f32 to vector<5x8x128xf32>
      %c0_35 = arith.constant 0 : index
      %c0_36 = arith.constant 0 : index
      %c0_37 = arith.constant 0 : index
      %46 = vector.load %arg3[%c0_35, %c0_36, %c0_37] : memref<5x8x128xf32, #tpu.memory_space<vmem>>, vector<5x8x128xf32>
      tpu.vector_store %arg3[%c0_35, %c0_36, %c0_37], %45 {strides = array<i32>} : memref<5x8x128xf32, #tpu.memory_space<vmem>>, vector<5x8x128xf32>,
    } else {
    }
    %c0 = arith.constant 0 : index
    %c0_1 = arith.constant 0 : index
    %3 = vector.load %arg1[%c0, %c0_1] : memref<16x128xf32, #tpu.memory_space<vmem>>, vector<16x128xf32>
    %c0_2 = arith.constant 0 : index
    %c0_3 = arith.constant 0 : index
    %4 = vector.load %arg2[%c0_2, %c0_3] : memref<16x128xf32, #tpu.memory_space<vmem>>, vector<16x128xf32>
    %5 = vector.shape_cast %3 : vector<16x128xf32> to vector<2x8x128xf32>
    %6 = vector.shape_cast %4 : vector<16x128xf32> to vector<2x8x128xf32>
    %c0_4 = arith.constant 0 : index
    %c0_5 = arith.constant 0 : index
    %c0_6 = arith.constant 0 : index
    %7 = vector.load %arg3[%c0_4, %c0_5, %c0_6] : memref<5x8x128xf32, #tpu.memory_space<vmem>>, vector<1x8x128xf32>
    %8 = vector.shape_cast %7 : vector<1x8x128xf32> to vector<8x128xf32>
    %cst = arith.constant dense<0.000000e+00> : vector<8x128xf32>
    %9 = vector.multi_reduction <add>, %5, %cst [0] : vector<2x8x128xf32> to vector<8x128xf32>
    %10 = arith.addf %8, %9 : vector<8x128xf32>
    %c0_7 = arith.constant 0 : index
    %c0_8 = arith.constant 0 : index
    %c0_9 = arith.constant 0 : index
    %11 = vector.load %arg3[%c0_7, %c0_8, %c0_9] : memref<5x8x128xf32, #tpu.memory_space<vmem>>, vector<1x8x128xf32>
    %12 = vector.shape_cast %11 : vector<1x8x128xf32> to vector<8x128xf32>
    %13 = vector.shape_cast %10 : vector<8x128xf32> to vector<1x8x128xf32>
    tpu.vector_store %arg3[%c0_7, %c0_8, %c0_9], %13 {strides = array<i32>} : memref<5x8x128xf32, #tpu.memory_space<vmem>>, vector<1x8x128xf32>,
    %c1 = arith.constant 1 : index
    %c0_10 = arith.constant 0 : index
    %c0_11 = arith.constant 0 : index
    %14 = vector.load %arg3[%c1, %c0_10, %c0_11] : memref<5x8x128xf32, #tpu.memory_space<vmem>>, vector<1x8x128xf32>
    %15 = vector.shape_cast %14 : vector<1x8x128xf32> to vector<8x128xf32>
    %cst_12 = arith.constant dense<0.000000e+00> : vector<8x128xf32>
    %16 = vector.multi_reduction <add>, %6, %cst_12 [0] : vector<2x8x128xf32> to vector<8x128xf32>
    %17 = arith.addf %15, %16 : vector<8x128xf32>
    %c1_13 = arith.constant 1 : index
    %c0_14 = arith.constant 0 : index
    %c0_15 = arith.constant 0 : index
    %18 = vector.load %arg3[%c1_13, %c0_14, %c0_15] : memref<5x8x128xf32, #tpu.memory_space<vmem>>, vector<1x8x128xf32>
    %19 = vector.shape_cast %18 : vector<1x8x128xf32> to vector<8x128xf32>
    %20 = vector.shape_cast %17 : vector<8x128xf32> to vector<1x8x128xf32>
    tpu.vector_store %arg3[%c1_13, %c0_14, %c0_15], %20 {strides = array<i32>} : memref<5x8x128xf32, #tpu.memory_space<vmem>>, vector<1x8x128xf32>,
    %c2 = arith.constant 2 : index
    %c0_16 = arith.constant 0 : index
    %c0_17 = arith.constant 0 : index
    %21 = vector.load %arg3[%c2, %c0_16, %c0_17] : memref<5x8x128xf32, #tpu.memory_space<vmem>>, vector<1x8x128xf32>
    %22 = vector.shape_cast %21 : vector<1x8x128xf32> to vector<8x128xf32>
    %23 = arith.mulf %5, %6 : vector<2x8x128xf32>
    %cst_18 = arith.constant dense<0.000000e+00> : vector<8x128xf32>
    %24 = vector.multi_reduction <add>, %23, %cst_18 [0] : vector<2x8x128xf32> to vector<8x128xf32>
    %25 = arith.addf %22, %24 : vector<8x128xf32>
    %c2_19 = arith.constant 2 : index
    %c0_20 = arith.constant 0 : index
    %c0_21 = arith.constant 0 : index
    %26 = vector.load %arg3[%c2_19, %c0_20, %c0_21] : memref<5x8x128xf32, #tpu.memory_space<vmem>>, vector<1x8x128xf32>
    %27 = vector.shape_cast %26 : vector<1x8x128xf32> to vector<8x128xf32>
    %28 = vector.shape_cast %25 : vector<8x128xf32> to vector<1x8x128xf32>
    tpu.vector_store %arg3[%c2_19, %c0_20, %c0_21], %28 {strides = array<i32>} : memref<5x8x128xf32, #tpu.memory_space<vmem>>, vector<1x8x128xf32>,
    %c3 = arith.constant 3 : index
    %c0_22 = arith.constant 0 : index
    %c0_23 = arith.constant 0 : index
    %29 = vector.load %arg3[%c3, %c0_22, %c0_23] : memref<5x8x128xf32, #tpu.memory_space<vmem>>, vector<1x8x128xf32>
    %30 = vector.shape_cast %29 : vector<1x8x128xf32> to vector<8x128xf32>
    %31 = arith.mulf %5, %5 : vector<2x8x128xf32>
    %cst_24 = arith.constant dense<0.000000e+00> : vector<8x128xf32>
    %32 = vector.multi_reduction <add>, %31, %cst_24 [0] : vector<2x8x128xf32> to vector<8x128xf32>
    %33 = arith.addf %30, %32 : vector<8x128xf32>
    %c3_25 = arith.constant 3 : index
    %c0_26 = arith.constant 0 : index
    %c0_27 = arith.constant 0 : index
    %34 = vector.load %arg3[%c3_25, %c0_26, %c0_27] : memref<5x8x128xf32, #tpu.memory_space<vmem>>, vector<1x8x128xf32>
    %35 = vector.shape_cast %34 : vector<1x8x128xf32> to vector<8x128xf32>
    %36 = vector.shape_cast %33 : vector<8x128xf32> to vector<1x8x128xf32>
    tpu.vector_store %arg3[%c3_25, %c0_26, %c0_27], %36 {strides = array<i32>} : memref<5x8x128xf32, #tpu.memory_space<vmem>>, vector<1x8x128xf32>,
    %c4 = arith.constant 4 : index
    %c0_28 = arith.constant 0 : index
    %c0_29 = arith.constant 0 : index
    %37 = vector.load %arg3[%c4, %c0_28, %c0_29] : memref<5x8x128xf32, #tpu.memory_space<vmem>>, vector<1x8x128xf32>
    %38 = vector.shape_cast %37 : vector<1x8x128xf32> to vector<8x128xf32>
    %39 = arith.mulf %6, %6 : vector<2x8x128xf32>
    %cst_30 = arith.constant dense<0.000000e+00> : vector<8x128xf32>
    %40 = vector.multi_reduction <add>, %39, %cst_30 [0] : vector<2x8x128xf32> to vector<8x128xf32>
    %41 = arith.addf %38, %40 : vector<8x128xf32>
    %c4_31 = arith.constant 4 : index
    %c0_32 = arith.constant 0 : index
    %c0_33 = arith.constant 0 : index
    %42 = vector.load %arg3[%c4_31, %c0_32, %c0_33] : memref<5x8x128xf32, #tpu.memory_space<vmem>>, vector<1x8x128xf32>
    %43 = vector.shape_cast %42 : vector<1x8x128xf32> to vector<8x128xf32>
    %44 = vector.shape_cast %41 : vector<8x128xf32> to vector<1x8x128xf32>
    tpu.vector_store %arg3[%c4_31, %c0_32, %c0_33], %44 {strides = array<i32>} : memref<5x8x128xf32, #tpu.memory_space<vmem>>, vector<1x8x128xf32>,
    return
  }
  func.func @transform_0(%arg0: i32) -> (i32, i32) {
    %c0_i32 = arith.constant 0 : i32
    %c0_i32_0 = arith.constant 0 : i32
    return %arg0, %c0_i32 : i32, i32
  }
  func.func @transform_1(%arg0: i32) -> (i32, i32) {
    %c0_i32 = arith.constant 0 : i32
    %c0_i32_0 = arith.constant 0 : i32
    return %arg0, %c0_i32 : i32, i32
  }
  func.func @transform_2(%arg0: i32) -> (i32, i32, i32) {
    %c0_i32 = arith.constant 0 : i32
    %c0_i32_0 = arith.constant 0 : i32
    %c0_i32_1 = arith.constant 0 : i32
    %c0_i32_2 = arith.constant 0 : i32
    return %c0_i32, %c0_i32_0, %c0_i32_1 : i32, i32, i32
  }
}

</mosaic_0001>

<llo_original>
// kernel: tpu_custom_call.1
$region0: #{tpu_custom_call.1}
  #allocation0 [shape = 'u32[]', space=smem, size = 0x4, offset = 0x4, fixed_abs, tag = 'smem constant byte address 0x4 - core index']
  #allocation1 [shape = 'u32[72,128]{1,0:T(1,128)}', space=vmem, size = 0x9000, scoped, tag = 'internal scratch']
  %s0 = inlined_call_operand.hbm [shape: f32[16,128], index: 0, kind: input, shape index: {}]
  %s1 = inlined_call_operand.hbm [shape: f32[16,128], index: 1, kind: input, shape index: {}]
  %s2 = inlined_call_operand.hbm [shape: f32[5,8,128], index: 2, kind: output, shape index: {}]
  %s3 = sld [smem:[#allocation0]]
  $region30: #{tpu_custom_call.1} parent=0
    _
  %s5 = ssub.s32 1, %s3
  %s6 = scalar_select 0, %s5, %s3
  $region1: #{tpu_custom_call.1} parent=0
    #allocation2 [shape = 'u8[8192]{0}', space=vmem, size = 0x2000, scoped, tag = 'input window, operand 0, single buffered']
    #allocation3 [shape = 's32[1]{0}', space=sflag, size = 0x4, scoped, tag = 'scoped memory for tpu_custom_call.1']
    #allocation4 [shape = 's32[1]{0}', space=sflag, size = 0x4, scoped, tag = 'scoped memory for tpu_custom_call.1']
    #allocation5 [shape = 'u8[8192]{0}', space=vmem, size = 0x2000, scoped, tag = 'input window, operand 1, single buffered']
    #allocation6 [shape = 's32[1]{0}', space=sflag, size = 0x4, scoped, tag = 'scoped memory for tpu_custom_call.1']
    #allocation7 [shape = 'u8[20480]{0}', space=vmem, size = 0x5000, scoped, tag = 'output window, operand 0, single buffered']
    %7 = vsyncpa [#allocation3], 0
    %8 = vsyncpa [#allocation6], 0
    %9 = vsyncpa [#allocation4], 0
    // Predicated region
    $region2: #{tpu_custom_call.1} parent=1 // pred_check
      _
    $region3: #{tpu_custom_call.1} parent=1 // pred_check_branch
      %11 = sbr.rel (0) target = $region5
    $region4: #{tpu_custom_call.1} parent=1 // pred_region
      %13 = vsyncadd [#allocation3], 0
      %s14 = sshll.u32 %s0, 4
      %s15 = int_to_ptr.hbm [resolvable:$true] %s14
      %s16 = sshll.u32 [#allocation2], 4
      %s17 = int_to_ptr.vmem [resolvable:$true] %s16
      %22 = dma.hbm_to_vmem [thread:$0]  %s15, 256, %s17, [#allocation3], 128, 128, 8
    $region5: #{tpu_custom_call.1} parent=1 // pred_fallthru
      _
    // Predicated region
    $region6: #{tpu_custom_call.1} parent=1 // pred_check
      _
    $region7: #{tpu_custom_call.1} parent=1 // pred_check_branch
      %24 = sbr.rel (0) target = $region9
    $region8: #{tpu_custom_call.1} parent=1 // pred_region
      %26 = vsyncadd [#allocation6], 0
      %s27 = sshll.u32 %s1, 4
      %s28 = int_to_ptr.hbm [resolvable:$true] %s27
      %s29 = sshll.u32 [#allocation5], 4
      %s30 = int_to_ptr.vmem [resolvable:$true] %s29
      %35 = dma.hbm_to_vmem [thread:$0]  %s28, 256, %s30, [#allocation6], 128, 128, 8
    $region9: #{tpu_custom_call.1} parent=1 // pred_fallthru
      _
    // Predicated region
    $region10: #{tpu_custom_call.1} parent=1 // pred_check
      _
    $region11: #{tpu_custom_call.1} parent=1 // pred_check_branch
      %37 = sbr.rel (0) target = $region13
    $region12: #{tpu_custom_call.1} parent=1 // pred_region
      %39 = dma.done [#allocation3], 256
    $region13: #{tpu_custom_call.1} parent=1 // pred_fallthru
      _
    // Predicated region
    $region14: #{tpu_custom_call.1} parent=1 // pred_check
      _
    $region15: #{tpu_custom_call.1} parent=1 // pred_check_branch
      %41 = sbr.rel (0) target = $region17
    $region16: #{tpu_custom_call.1} parent=1 // pred_region
      %43 = dma.done [#allocation6], 256
    $region17: #{tpu_custom_call.1} parent=1 // pred_fallthru
      _
    %p44 = scmp.eq.s32.totalorder 0, 0
    // Predicated region
    $region18: #{tpu_custom_call.1} parent=1 // pred_check
      %p45 = pneg %p44
    $region19: #{tpu_custom_call.1} parent=1 // pred_check_branch
      %47 = sbr.rel (%p45) target = $region21
    $region20: #{tpu_custom_call.1} parent=1 // pred_region
      %48 = vst [vmem:[#allocation7] sm:$0xff] 0.0
      %49 = vst [vmem:[#allocation7 + $0x8] sm:$0xff] 0.0
      %50 = vst [vmem:[#allocation7 + $0x10] sm:$0xff] 0.0
      %51 = vst [vmem:[#allocation7 + $0x18] sm:$0xff] 0.0
      %52 = vst [vmem:[#allocation7 + $0x20] sm:$0xff] 0.0
    $region21: #{tpu_custom_call.1} parent=1 // pred_fallthru
      _
    %v53 = vld [vmem:[#allocation2] sm:$0xff]
    %v54 = vld [vmem:[#allocation2 + $0x8] sm:$0xff]
    %v55 = vld [vmem:[#allocation5] sm:$0xff]
    %v56 = vld [vmem:[#allocation5 + $0x8] sm:$0xff]
    %v57 = vld [vmem:[#allocation7] sm:$0xff]
    %v58 = vadd.f32 %v53, %v54
    %v59 = vadd.f32 %v57, %v58
    %60 = vst [vmem:[#allocation7] sm:$0xff] %v59
    %s61 = scalar_lea.vmem [#allocation7], 8
    %v62 = vld [vmem:[%s61] sm:$0xff]
    %v63 = vadd.f32 %v55, %v56
    %v64 = vadd.f32 %v62, %v63
    %65 = vst [vmem:[%s61] sm:$0xff] %v64
    %s66 = scalar_lea.vmem [#allocation7], 16
    %v67 = vld [vmem:[%s66] sm:$0xff]
    %v68 = vmul.f32 %v53, %v55
    %v69 = vmul.f32 %v54, %v56
    %v70 = vadd.f32 %v68, %v69
    %v71 = vadd.f32 %v67, %v70
    %72 = vst [vmem:[%s66] sm:$0xff] %v71
    %s73 = scalar_lea.vmem [#allocation7], 24
    %v74 = vld [vmem:[%s73] sm:$0xff]
    %v75 = vmul.f32 %v53, %v53
    %v76 = vmul.f32 %v54, %v54
    %v77 = vadd.f32 %v75, %v76
    %v78 = vadd.f32 %v74, %v77
    %79 = vst [vmem:[%s73] sm:$0xff] %v78
    %s80 = scalar_lea.vmem [#allocation7], 32
    %v81 = vld [vmem:[%s80] sm:$0xff]
    %v82 = vmul.f32 %v55, %v55
    %v83 = vmul.f32 %v56, %v56
    %v84 = vadd.f32 %v82, %v83
    %v85 = vadd.f32 %v81, %v84
    %86 = vst [vmem:[%s80] sm:$0xff] %v85
    // Predicated region
    $region22: #{tpu_custom_call.1} parent=1 // pred_check
      _
    $region23: #{tpu_custom_call.1} parent=1 // pred_check_branch
      %88 = sbr.rel (0) target = $region25
    $region24: #{tpu_custom_call.1} parent=1 // pred_region
      %90 = vsyncadd [#allocation4], 0
      %s91 = sshll.u32 [#allocation7], 4
      %s92 = int_to_ptr.vmem [resolvable:$true] %s91
      %s93 = sshll.u32 %s2, 4
      %s94 = int_to_ptr.hbm [resolvable:$true] %s93
      %99 = dma.vmem_to_hbm [thread:$0]  %s92, 640, %s94, [#allocation4], 128, 128, 8
    $region25: #{tpu_custom_call.1} parent=1 // pred_fallthru
      _
    // Predicated region
    $region26: #{tpu_custom_call.1} parent=1 // pred_check
      _
    $region27: #{tpu_custom_call.1} parent=1 // pred_check_branch
      %101 = sbr.rel (0) target = $region29
    $region28: #{tpu_custom_call.1} parent=1 // pred_region
      %103 = dma.done [#allocation4], 640
    $region29: #{tpu_custom_call.1} parent=1 // pred_fallthru
      _
    %104 = vsyncpa [#allocation3], 1
    %105 = vsyncpa [#allocation6], 1
    %106 = vsyncpa [#allocation4], 1

</llo_original>
